<compile_context>
chip_gen: v7x
topology: tpu7x:2x2x1
jax: 0.10.0
libtpu: 0.0.40
codegen_flags: <defaults>
</compile_context>

<pallas_src>
import functools

import jax
import jax.numpy as jnp
from jax import lax
from jax.experimental import pallas as pl
from jax.experimental.pallas import tpu as pltpu


def _round_up(x, m):
    return (x + m - 1) // m * m


def _semi_basic_block_kernel(xf_ref, w_ref, bias_ref, o_ref, patch_ref,
                             *, wp2, cin, r_compute):
    """One grid step = one image, channel-major flattened layout.

    xf_ref   : (1, Cin, R_IN)       zero-padded image, spatial flattened on lanes (f32)
    w_ref    : (Cout, 9*Cin)        conv3x3 weights * BN scale, bf16 (resident)
    bias_ref : (Cout, 1)            folded BN bias (f32)
    o_ref    : (1, Cout, R_COMPUTE) output, lane-dense (R_COMPUTE % 128 == 0)
    patch_ref: (9*Cin, R_COMPUTE)   bf16 im2col scratch (VMEM)
    """
    xf = xf_ref[0]                              # (Cin, R_IN) f32, stays in vregs
    xf_bf = xf.astype(jnp.bfloat16)             # single cast for all 9 taps

    # im2col: each tap (kh, kw) is a contiguous lane-offset window of the flat slab.
    # Row offset in the padded image: kh*(W+2) + kw.
    for kh in range(3):
        for kw in range(3):
            t = kh * 3 + kw
            off = kh * wp2 + kw
            patch_ref[t * cin:(t + 1) * cin, :] = xf_bf[:, off:off + r_compute]

    # One deep matmul on the MXU: (Cout, 9*Cin) x (9*Cin, R) -> (Cout, R), f32 acc.
    acc = jnp.dot(w_ref[...], patch_ref[...], preferred_element_type=jnp.float32)

    # Folded BN bias (scale already folded into the weights) + residual (f32) + ReLU.
    residual = xf[:, wp2 + 1: wp2 + 1 + r_compute]          # centre tap == input itself
    out = acc + bias_ref[...] + residual
    o_ref[0] = jnp.maximum(out, 0.0).astype(o_ref.dtype)


@functools.partial(jax.jit, static_argnames=("eps",))
def semi_basic_block(x_nchw, weight, gamma, beta, running_mean, running_var, eps=1e-5):
    """Forward pass of SemiBasicBlock (stride=1, dilation=1, downsample=None).

    x_nchw : (N, Cin, H, W) f32 (PyTorch layout, consumed directly — no transposes)
    weight : (Cout, Cin, 3, 3) f32
    gamma, beta, running_mean, running_var : (Cout,)
    returns: (N, Cout, H, W) f32
    """
    N, Cin, H, W = x_nchw.shape
    Cout = weight.shape[0]
    if Cin != Cout:
        raise ValueError(
            "SemiBasicBlock residual path requires inplanes == planes "
            f"(got Cin={Cin}, Cout={Cout}).")

    wp2 = W + 2
    r_valid = H * wp2                               # valid "wide" output rows
    r_compute = _round_up(r_valid, 128)             # lane-dense compute/store width
    r_in = _round_up(r_compute + 2 * wp2 + 2, 128)  # flat input length incl. tap reach

    # ---- wrapper-side prep (layout + parameter folding only) ----
    # Zero-pad H and W, flatten spatial, zero-pad flat axis to r_in.
    x_pad = jnp.pad(x_nchw, ((0, 0), (0, 0), (1, 1), (1, 1)))          # (N,Cin,H+2,W+2)
    xf = x_pad.reshape(N, Cin, (H + 2) * wp2)
    xf = jnp.pad(xf, ((0, 0), (0, 0), (0, r_in - (H + 2) * wp2)))       # (N,Cin,r_in)

    # Repack weights to (Cout, 9*Cin), fold BN scale, cast to bf16 for the MXU.
    w9 = jnp.transpose(weight, (0, 2, 3, 1)).reshape(Cout, 9 * Cin)     # [co,(kh*3+kw)*Cin+ci]
    inv_std = lax.rsqrt(running_var + eps)
    scale = gamma * inv_std                                             # (Cout,)
    bias = (beta - running_mean * scale).reshape(Cout, 1).astype(jnp.float32)
    w_scaled = (w9 * scale[:, None]).astype(jnp.bfloat16)

    kernel = functools.partial(_semi_basic_block_kernel,
                               wp2=wp2, cin=Cin, r_compute=r_compute)

    out_flat = pl.pallas_call(
        kernel,
        out_shape=jax.ShapeDtypeStruct((N, Cout, r_compute), x_nchw.dtype),
        grid_spec=pltpu.PrefetchScalarGridSpec(
            num_scalar_prefetch=0,
            grid=(N,),
            in_specs=[
                pl.BlockSpec((1, Cin, r_in), lambda n: (n, 0, 0)),
                pl.BlockSpec((Cout, 9 * Cin), lambda n: (0, 0)),   # resident weights
                pl.BlockSpec((Cout, 1), lambda n: (0, 0)),
            ],
            out_specs=pl.BlockSpec((1, Cout, r_compute), lambda n: (n, 0, 0)),
            scratch_shapes=[pltpu.VMEM((9 * Cin, r_compute), jnp.bfloat16)],
        ),
        compiler_params=pltpu.CompilerParams(
            dimension_semantics=("parallel",),        # N>=2 steps -> both v7x TCs busy
            vmem_limit_bytes=32 * 1024 * 1024,
        ),
    )(xf, w_scaled, bias)

    # Drop the 2 wide columns per row + the lane-padding rows; already NCHW.
    out = out_flat[:, :, :r_valid].reshape(N, Cout, H, wp2)[:, :, :, :W]
    return out


def _reference(x_nchw, weight, gamma, beta, running_mean, running_var, eps=1e-5):
    """Pure-JAX reference (NCHW conv via lax) for correctness checking."""
    conv = lax.conv_general_dilated(
        x_nchw, weight, window_strides=(1, 1), padding=((1, 1), (1, 1)),
        dimension_numbers=("NCHW", "OIHW", "NCHW"))
    inv_std = lax.rsqrt(running_var + eps)
    bn = (conv - running_mean[None, :, None, None]) * inv_std[None, :, None, None]
    bn = bn * gamma[None, :, None, None] + beta[None, :, None, None]
    return jnp.maximum(bn + x_nchw, 0.0)


if __name__ == "__main__":
    # inplanes = planes = 32 (residual path requires equal channels), batch=2, 16x16.
    N, C, H, W = 2, 32, 16, 16

    key = jax.random.PRNGKey(0)
    kx, kw, kg, kb, km, kv = jax.random.split(key, 6)

    x = jax.random.normal(kx, (N, C, H, W), dtype=jnp.float32)
    weight = 0.1 * jax.random.normal(kw, (C, C, 3, 3), dtype=jnp.float32)
    gamma = 1.0 + 0.1 * jax.random.normal(kg, (C,), dtype=jnp.float32)
    beta = 0.1 * jax.random.normal(kb, (C,), dtype=jnp.float32)
    running_mean = 0.1 * jax.random.normal(km, (C,), dtype=jnp.float32)
    running_var = jnp.abs(1.0 + 0.1 * jax.random.normal(kv, (C,), dtype=jnp.float32))

    out = semi_basic_block(x, weight, gamma, beta, running_mean, running_var)
    out = jax.block_until_ready(out)

    ref = _reference(x, weight, gamma, beta, running_mean, running_var)
    assert out.shape == (N, C, H, W)
    # bf16 MXU operands (f32 accumulation) -> loosened tolerance vs the f32 reference.
    assert jnp.allclose(out, ref, atol=5e-2, rtol=5e-2), "mismatch vs reference"

    print("KERNEL_OK")
</pallas_src>

<mosaic_0001>
module attributes {stable_mosaic.version = 11 : i64} {
  func.func @_semi_basic_block_kernel(%arg0: i32, %arg1: memref<1x32x512xf32, #tpu.memory_space<vmem>>, %arg2: memref<32x288xbf16, #tpu.memory_space<vmem>>, %arg3: memref<32x1xf32, #tpu.memory_space<vmem>>, %arg4: memref<1x32x384xf32, #tpu.memory_space<vmem>>, %arg5: memref<288x384xbf16, #tpu.memory_space<vmem>>) attributes {dimension_semantics = [#tpu.dimension_semantics<parallel>], iteration_bounds = array<i64: 2>, scalar_prefetch = 0 : i64, scratch_operands = 1 : i64, tpu.core_type = #tpu.core_type<tc>, window_params = [{transform_indices = @transform_0, window_bounds = array<i64: 1, 32, 512>}, {pipeline_mode = #tpu.pipeline_mode<synchronous>, transform_indices = @transform_1, window_bounds = array<i64: 32, 288>}, {pipeline_mode = #tpu.pipeline_mode<synchronous>, transform_indices = @transform_2, window_bounds = array<i64: 32, 1>}, {transform_indices = @transform_3, window_bounds = array<i64: 1, 32, 384>}]} {
    %c0 = arith.constant 0 : index
    %c0_0 = arith.constant 0 : index
    %c0_1 = arith.constant 0 : index
    %0 = vector.load %arg1[%c0, %c0_0, %c0_1] : memref<1x32x512xf32, #tpu.memory_space<vmem>>, vector<1x32x512xf32>
    %1 = vector.shape_cast %0 : vector<1x32x512xf32> to vector<32x512xf32>
    %2 = arith.truncf %1 : vector<32x512xf32> to vector<32x512xbf16>
    %3 = vector.extract_strided_slice %2 {offsets = [0, 0], sizes = [32, 384], strides = [1, 1]} : vector<32x512xbf16> to vector<32x384xbf16>
    %c0_2 = arith.constant 0 : index
    %c0_3 = arith.constant 0 : index
    %4 = vector.load %arg5[%c0_2, %c0_3] : memref<288x384xbf16, #tpu.memory_space<vmem>>, vector<32x384xbf16>
    tpu.vector_store %arg5[%c0_2, %c0_3], %3 {strides = array<i32>} : memref<288x384xbf16, #tpu.memory_space<vmem>>, vector<32x384xbf16>,
    %5 = vector.extract_strided_slice %2 {offsets = [0, 1], sizes = [32, 384], strides = [1, 1]} : vector<32x512xbf16> to vector<32x384xbf16>
    %c32 = arith.constant 32 : index
    %c0_4 = arith.constant 0 : index
    %6 = vector.load %arg5[%c32, %c0_4] : memref<288x384xbf16, #tpu.memory_space<vmem>>, vector<32x384xbf16>
    tpu.vector_store %arg5[%c32, %c0_4], %5 {strides = array<i32>} : memref<288x384xbf16, #tpu.memory_space<vmem>>, vector<32x384xbf16>,
    %7 = vector.extract_strided_slice %2 {offsets = [0, 2], sizes = [32, 384], strides = [1, 1]} : vector<32x512xbf16> to vector<32x384xbf16>
    %c64 = arith.constant 64 : index
    %c0_5 = arith.constant 0 : index
    %8 = vector.load %arg5[%c64, %c0_5] : memref<288x384xbf16, #tpu.memory_space<vmem>>, vector<32x384xbf16>
    tpu.vector_store %arg5[%c64, %c0_5], %7 {strides = array<i32>} : memref<288x384xbf16, #tpu.memory_space<vmem>>, vector<32x384xbf16>,
    %9 = vector.extract_strided_slice %2 {offsets = [0, 18], sizes = [32, 384], strides = [1, 1]} : vector<32x512xbf16> to vector<32x384xbf16>
    %c96 = arith.constant 96 : index
    %c0_6 = arith.constant 0 : index
    %10 = vector.load %arg5[%c96, %c0_6] : memref<288x384xbf16, #tpu.memory_space<vmem>>, vector<32x384xbf16>
    tpu.vector_store %arg5[%c96, %c0_6], %9 {strides = array<i32>} : memref<288x384xbf16, #tpu.memory_space<vmem>>, vector<32x384xbf16>,
    %11 = vector.extract_strided_slice %2 {offsets = [0, 19], sizes = [32, 384], strides = [1, 1]} : vector<32x512xbf16> to vector<32x384xbf16>
    %c128 = arith.constant 128 : index
    %c0_7 = arith.constant 0 : index
    %12 = vector.load %arg5[%c128, %c0_7] : memref<288x384xbf16, #tpu.memory_space<vmem>>, vector<32x384xbf16>
    tpu.vector_store %arg5[%c128, %c0_7], %11 {strides = array<i32>} : memref<288x384xbf16, #tpu.memory_space<vmem>>, vector<32x384xbf16>,
    %13 = vector.extract_strided_slice %2 {offsets = [0, 20], sizes = [32, 384], strides = [1, 1]} : vector<32x512xbf16> to vector<32x384xbf16>
    %c160 = arith.constant 160 : index
    %c0_8 = arith.constant 0 : index
    %14 = vector.load %arg5[%c160, %c0_8] : memref<288x384xbf16, #tpu.memory_space<vmem>>, vector<32x384xbf16>
    tpu.vector_store %arg5[%c160, %c0_8], %13 {strides = array<i32>} : memref<288x384xbf16, #tpu.memory_space<vmem>>, vector<32x384xbf16>,
    %15 = vector.extract_strided_slice %2 {offsets = [0, 36], sizes = [32, 384], strides = [1, 1]} : vector<32x512xbf16> to vector<32x384xbf16>
    %c192 = arith.constant 192 : index
    %c0_9 = arith.constant 0 : index
    %16 = vector.load %arg5[%c192, %c0_9] : memref<288x384xbf16, #tpu.memory_space<vmem>>, vector<32x384xbf16>
    tpu.vector_store %arg5[%c192, %c0_9], %15 {strides = array<i32>} : memref<288x384xbf16, #tpu.memory_space<vmem>>, vector<32x384xbf16>,
    %17 = vector.extract_strided_slice %2 {offsets = [0, 37], sizes = [32, 384], strides = [1, 1]} : vector<32x512xbf16> to vector<32x384xbf16>
    %c224 = arith.constant 224 : index
    %c0_10 = arith.constant 0 : index
    %18 = vector.load %arg5[%c224, %c0_10] : memref<288x384xbf16, #tpu.memory_space<vmem>>, vector<32x384xbf16>
    tpu.vector_store %arg5[%c224, %c0_10], %17 {strides = array<i32>} : memref<288x384xbf16, #tpu.memory_space<vmem>>, vector<32x384xbf16>,
    %19 = vector.extract_strided_slice %2 {offsets = [0, 38], sizes = [32, 384], strides = [1, 1]} : vector<32x512xbf16> to vector<32x384xbf16>
    %c256 = arith.constant 256 : index
    %c0_11 = arith.constant 0 : index
    %20 = vector.load %arg5[%c256, %c0_11] : memref<288x384xbf16, #tpu.memory_space<vmem>>, vector<32x384xbf16>
    tpu.vector_store %arg5[%c256, %c0_11], %19 {strides = array<i32>} : memref<288x384xbf16, #tpu.memory_space<vmem>>, vector<32x384xbf16>,
    %c0_12 = arith.constant 0 : index
    %c0_13 = arith.constant 0 : index
    %21 = vector.load %arg2[%c0_12, %c0_13] : memref<32x288xbf16, #tpu.memory_space<vmem>>, vector<32x288xbf16>
    %c0_14 = arith.constant 0 : index
    %c0_15 = arith.constant 0 : index
    %22 = vector.load %arg5[%c0_14, %c0_15] : memref<288x384xbf16, #tpu.memory_space<vmem>>, vector<288x384xbf16>
    %cst = arith.constant dense<0.000000e+00> : vector<32x384xf32>
    %23 = tpu.matmul %21, %22, %cst {dimension_numbers = #tpu.dot_dimension_numbers<[1], [0], [0], [1], [0, 0, 1, 1], [], []>} : vector<32x288xbf16>, vector<288x384xbf16>, vector<32x384xf32> -> vector<32x384xf32>
    %24 = vector.extract_strided_slice %1 {offsets = [0, 19], sizes = [32, 384], strides = [1, 1]} : vector<32x512xf32> to vector<32x384xf32>
    %c0_16 = arith.constant 0 : index
    %c0_17 = arith.constant 0 : index
    %25 = vector.load %arg3[%c0_16, %c0_17] : memref<32x1xf32, #tpu.memory_space<vmem>>, vector<32x1xf32>
    %26 = vector.broadcast %25 : vector<32x1xf32> to vector<32x384xf32>
    %27 = arith.addf %23, %26 : vector<32x384xf32>
    %28 = arith.addf %27, %24 : vector<32x384xf32>
    %cst_18 = arith.constant 0.000000e+00 : f32
    %29 = vector.broadcast %cst_18 : f32 to vector<32x384xf32>
    %30 = arith.maximumf %28, %29 : vector<32x384xf32>
    %c0_19 = arith.constant 0 : index
    %c0_20 = arith.constant 0 : index
    %c0_21 = arith.constant 0 : index
    %31 = vector.load %arg4[%c0_19, %c0_20, %c0_21] : memref<1x32x384xf32, #tpu.memory_space<vmem>>, vector<1x32x384xf32>
    %32 = vector.shape_cast %31 : vector<1x32x384xf32> to vector<32x384xf32>
    %33 = vector.shape_cast %30 : vector<32x384xf32> to vector<1x32x384xf32>
    tpu.vector_store %arg4[%c0_19, %c0_20, %c0_21], %33 {strides = array<i32>} : memref<1x32x384xf32, #tpu.memory_space<vmem>>, vector<1x32x384xf32>,
    return
  }
  func.func @transform_0(%arg0: i32) -> (i32, i32, i32) {
    %c0_i32 = arith.constant 0 : i32
    %c0_i32_0 = arith.constant 0 : i32
    %c0_i32_1 = arith.constant 0 : i32
    return %arg0, %c0_i32, %c0_i32_0 : i32, i32, i32
  }
  func.func @transform_1(%arg0: i32) -> (i32, i32) {
    %c0_i32 = arith.constant 0 : i32
    %c0_i32_0 = arith.constant 0 : i32
    %c0_i32_1 = arith.constant 0 : i32
    return %c0_i32, %c0_i32_0 : i32, i32
  }
  func.func @transform_2(%arg0: i32) -> (i32, i32) {
    %c0_i32 = arith.constant 0 : i32
    %c0_i32_0 = arith.constant 0 : i32
    %c0_i32_1 = arith.constant 0 : i32
    return %c0_i32, %c0_i32_0 : i32, i32
  }
  func.func @transform_3(%arg0: i32) -> (i32, i32, i32) {
    %c0_i32 = arith.constant 0 : i32
    %c0_i32_0 = arith.constant 0 : i32
    %c0_i32_1 = arith.constant 0 : i32
    return %arg0, %c0_i32, %c0_i32_0 : i32, i32, i32
  }
}

</mosaic_0001>

<llo_original>
// kernel: semi_basic_block.1
$region0: #{semi_basic_block.1}
  #allocation0 [shape = 'u32[]', space=smem, size = 0x4, offset = 0x4, fixed_abs, tag = 'smem constant byte address 0x4 - core index']
  #allocation1 [shape = 'u32[144,128]{1,0:T(1,128)}', space=vmem, size = 0x12000, scoped, tag = 'internal scratch']
  #allocation2 [shape = 'bf16[288,384]{1,0:T(16,128)(2,1)}', space=vmem, size = 0x36000, scoped, tag = 'scratch operand']
  %s0 = inlined_call_operand.vmem [shape: f32[2,32,512], index: 0, kind: input, shape index: {}]
  %s1 = inlined_call_operand.vmem [shape: bf16[32,288], index: 1, kind: input, shape index: {}]
  %s2 = inlined_call_operand.vmem [shape: f32[32,1], index: 2, kind: input, shape index: {}]
  %s3 = inlined_call_operand.vmem [shape: f32[2,32,384], index: 3, kind: output, shape index: {}]
  %s4 = sld [smem:[#allocation0]]
  $region45: #{semi_basic_block.1} parent=0
    _
  %s6 = ssub.s32 1, %s4
  %s7 = scalar_select 0, %s6, %s4
  loop: start=0, step=1, limit=4
  $region2: #{semi_basic_block.1} parent=0 // loop_pre_header
    _
  $region3: #{semi_basic_block.1} parent=0 // loop_header
    %s9 = sphi 0, %s13
    %p10 = scmp.ge.s32.totalorder %s9, 4
    %s19 = sphi 0, %s21
    %s22 = sphi 0, %s19
    %s23 = sphi 0, %s22
    %s39 = sphi 0, %s23
    %s43 = sphi 0, %s43
    %s45 = sphi 0, %s43
    %s46 = sphi 0, %s45
    %s60 = sphi 0, %s46
    %s64 = sphi 0, %s64
    %s66 = sphi 0, %s64
    %s67 = sphi 0, %s66
    %s81 = sphi 0, %s67
    %s87 = sphi 0, %s89
    %s90 = sphi 0, %s87
    %s91 = sphi 0, %s90
    %s107 = sphi 0, %s91
  $region4: #{semi_basic_block.1} parent=0 // loop_header_branch
    %12 = sbr.rel (%p10) target = $region8
  $region5: #{semi_basic_block.1} parent=0 // loop_body
    %s14 = ssub.s32 %s9, 1
    %s15 = ssub.s32 %s9, 2
    %s16 = sadd.s32 %s9, 1
    %s17 = ssub.s32 %s9, %s16
    %p18 = scmp.eq.s32.totalorder %s17, 0
    %s20 = sadd.s32 %s19, 1
    %s21 = scalar_select %p18, %s19, %s20
    %p24 = pneg %p18
    %p25 = scmp.eq.s32.totalorder %s9, 1
    %p26 = por %p24, %p25
    %p27 = scmp.ne.s32.totalorder %s19, %s22
    %p28 = scmp.eq.s32.totalorder %s9, 0
    %p29 = por %p27, %p28
    %p30 = scmp.ne.s32.totalorder %s19, %s22
    %p31 = scmp.eq.s32.totalorder %s14, 1
    %p32 = por %p30, %p31
    %p33 = scmp.ne.s32.totalorder %s22, %s23
    %p34 = scmp.eq.s32.totalorder %s14, 0
    %p35 = por %p33, %p34
    %p36 = scmp.ne.s32.totalorder %s22, %s23
    %p37 = scmp.eq.s32.totalorder %s15, 1
    %p38 = por %p36, %p37
    %p40 = scmp.ne.s32.totalorder %s23, %s39
    %p41 = scmp.eq.s32.totalorder %s15, 0
    %p42 = por %p40, %p41
    %s44 = sadd.s32 %s43, 1
    %p47 = scmp.eq.s32.totalorder %s9, 1
    %p48 = scmp.ne.s32.totalorder %s43, %s45
    %p49 = scmp.eq.s32.totalorder %s9, 0
    %p50 = por %p48, %p49
    %p51 = scmp.ne.s32.totalorder %s43, %s45
    %p52 = scmp.eq.s32.totalorder %s14, 1
    %p53 = por %p51, %p52
    %p54 = scmp.ne.s32.totalorder %s45, %s46
    %p55 = scmp.eq.s32.totalorder %s14, 0
    %p56 = por %p54, %p55
    %p57 = scmp.ne.s32.totalorder %s45, %s46
    %p58 = scmp.eq.s32.totalorder %s15, 1
    %p59 = por %p57, %p58
    %p61 = scmp.ne.s32.totalorder %s46, %s60
    %p62 = scmp.eq.s32.totalorder %s15, 0
    %p63 = por %p61, %p62
    %s65 = sadd.s32 %s64, 1
    %p68 = scmp.eq.s32.totalorder %s9, 1
    %p69 = scmp.ne.s32.totalorder %s64, %s66
    %p70 = scmp.eq.s32.totalorder %s9, 0
    %p71 = por %p69, %p70
    %p72 = scmp.ne.s32.totalorder %s64, %s66
    %p73 = scmp.eq.s32.totalorder %s14, 1
    %p74 = por %p72, %p73
    %p75 = scmp.ne.s32.totalorder %s66, %s67
    %p76 = scmp.eq.s32.totalorder %s14, 0
    %p77 = por %p75, %p76
    %p78 = scmp.ne.s32.totalorder %s66, %s67
    %p79 = scmp.eq.s32.totalorder %s15, 1
    %p80 = por %p78, %p79
    %p82 = scmp.ne.s32.totalorder %s67, %s81
    %p83 = scmp.eq.s32.totalorder %s15, 0
    %p84 = por %p82, %p83
    %s85 = ssub.s32 %s9, %s16
    %p86 = scmp.eq.s32.totalorder %s85, 0
    %s88 = sadd.s32 %s87, 1
    %s89 = scalar_select %p86, %s87, %s88
    %p92 = pneg %p86
    %p93 = scmp.eq.s32.totalorder %s9, 1
    %p94 = por %p92, %p93
    %p95 = scmp.ne.s32.totalorder %s87, %s90
    %p96 = scmp.eq.s32.totalorder %s9, 0
    %p97 = por %p95, %p96
    %p98 = scmp.ne.s32.totalorder %s87, %s90
    %p99 = scmp.eq.s32.totalorder %s14, 1
    %p100 = por %p98, %p99
    %p101 = scmp.ne.s32.totalorder %s90, %s91
    %p102 = scmp.eq.s32.totalorder %s14, 0
    %p103 = por %p101, %p102
    %p104 = scmp.ne.s32.totalorder %s90, %s91
    %p105 = scmp.eq.s32.totalorder %s15, 1
    %p106 = por %p104, %p105
    %p108 = scmp.ne.s32.totalorder %s91, %s107
    %p109 = scmp.eq.s32.totalorder %s15, 0
    %p110 = por %p108, %p109
    %p111 = scmp.le.s32.totalorder 1, %s9
    %p112 = scmp.lt.s32.totalorder %s9, 3
    %p113 = pnand %p111, %p112
    %p114 = pneg %p113
    // Predicated region
    $region9: #{semi_basic_block.1} parent=5 // pred_check
      _
    $region10: #{semi_basic_block.1} parent=5 // pred_check_branch
      %116 = sbr.rel (%p113) target = $region12
    $region11: #{semi_basic_block.1} parent=5 // pred_region
      %s117 = ssub.s32 %s9, 1
      // Predicated region
      $region13: #{semi_basic_block.1} parent=11 // pred_check
        %p118 = pneg %p56
      $region14: #{semi_basic_block.1} parent=11 // pred_check_branch
        %120 = sbr.rel (%p118) target = $region16
      $region15: #{semi_basic_block.1} parent=11 // pred_region
        _
      $region16: #{semi_basic_block.1} parent=11 // pred_fallthru
        _
      // Predicated region
      $region17: #{semi_basic_block.1} parent=11 // pred_check
        %p121 = pneg %p77
      $region18: #{semi_basic_block.1} parent=11 // pred_check_branch
        %123 = sbr.rel (%p121) target = $region20
      $region19: #{semi_basic_block.1} parent=11 // pred_region
        _
      $region20: #{semi_basic_block.1} parent=11 // pred_fallthru
        _
    $region12: #{semi_basic_block.1} parent=5 // pred_fallthru
      _
    %p124 = scmp.lt.s32.totalorder %s9, 2
    // Predicated region
    $region21: #{semi_basic_block.1} parent=5 // pred_check
      %p125 = pneg %p124
    $region22: #{semi_basic_block.1} parent=5 // pred_check_branch
      %127 = sbr.rel (%p125) target = $region24
    $region23: #{semi_basic_block.1} parent=5 // pred_region
      // Predicated region
      $region25: #{semi_basic_block.1} parent=23 // pred_check
        %p128 = pneg %p29
      $region26: #{semi_basic_block.1} parent=23 // pred_check_branch
        %130 = sbr.rel (%p128) target = $region28
      $region27: #{semi_basic_block.1} parent=23 // pred_region
        %p131 = scmp.lt.s32.totalorder %s9, 1
        %s132 = scalar_select %p131, %s9, 1
        %s133 = smul.addr %s132, 16
        %s134 = smul.addr %s133, 8
        %s135 = scalar_lea.vmem %s0, %s134
      $region28: #{semi_basic_block.1} parent=23 // pred_fallthru
        _
    $region24: #{semi_basic_block.1} parent=5 // pred_fallthru
      _
    %p136 = scmp.le.s32.totalorder 1, %s9
    %p137 = scmp.lt.s32.totalorder %s9, 3
    %p138 = pnand %p136, %p137
    %p139 = pneg %p138
    // Predicated region
    $region29: #{semi_basic_block.1} parent=5 // pred_check
      _
    $region30: #{semi_basic_block.1} parent=5 // pred_check_branch
      %141 = sbr.rel (%p138) target = $region32
    $region31: #{semi_basic_block.1} parent=5 // pred_region
      %s142 = ssub.s32 %s9, 1
      %p143 = scmp.lt.s32.totalorder %s14, 1
      %s144 = scalar_select %p143, %s14, 1
      %s145 = smul.addr %s144, 16
      %s146 = smul.addr %s145, 8
      %s147 = scalar_lea.vmem %s0, %s146
      %p148 = pneg %p35
      %p149 = pneg %p32
      %p150 = pneg %p56
      %p151 = pneg %p53
      %p152 = pneg %p77
      %p153 = pneg %p74
      %p154 = pneg %p103
      %p155 = pneg %p100
      %p156 = scmp.lt.s32.totalorder %s14, 1
      %s157 = scalar_select %p156, %s14, 1
      %s158 = smul.addr %s157, 12
      %s159 = smul.addr %s158, 8
      %s160 = scalar_lea.vmem %s3, %s159
      %p161 = scmp.lt.s32.totalorder %s14, 1
      %s162 = scalar_select %p161, %s14, 1
      %s163 = smul.addr %s162, 16
      %s164 = smul.addr %s163, 8
      %s165 = scalar_lea.vmem %s0, %s164
      %p166 = scmp.lt.s32.totalorder %s14, 1
      %s167 = scalar_select %p166, %s14, 1
      %s168 = smul.addr %s167, 12
      %s169 = smul.addr %s168, 8
      %s170 = scalar_lea.vmem %s3, %s169
      %v172 = vld [vmem:[%s165] sm:$0xff]
      %v173 = vld [vmem:[%s165 + $0x8] sm:$0xff]
      %v174 = vld [vmem:[%s165 + $0x10] sm:$0xff]
      %v175 = vld [vmem:[%s165 + $0x18] sm:$0xff]
      %v176 = vld [vmem:[%s165 + $0x20] sm:$0xff]
      %v177 = vld [vmem:[%s165 + $0x28] sm:$0xff]
      %v178 = vld [vmem:[%s165 + $0x30] sm:$0xff]
      %v179 = vld [vmem:[%s165 + $0x38] sm:$0xff]
      %v180 = vld [vmem:[%s165 + $0x40] sm:$0xff]
      %v181 = vld [vmem:[%s165 + $0x48] sm:$0xff]
      %v182 = vld [vmem:[%s165 + $0x50] sm:$0xff]
      %v183 = vld [vmem:[%s165 + $0x58] sm:$0xff]
      %v184 = vld [vmem:[%s165 + $0x60] sm:$0xff]
      %v185 = vld [vmem:[%s165 + $0x68] sm:$0xff]
      %v186 = vld [vmem:[%s165 + $0x70] sm:$0xff]
      %v187 = vld [vmem:[%s165 + $0x78] sm:$0xff]
      %v188 = vpack.c.bf16 %v176, %v172
      %v189 = vpack.c.bf16 %v177, %v173
      %v190 = vpack.c.bf16 %v178, %v174
      %v191 = vpack.c.bf16 %v179, %v175
      %v192 = vpack.c.bf16 %v184, %v180
      %v193 = vpack.c.bf16 %v185, %v181
      %v194 = vpack.c.bf16 %v186, %v182
      %v195 = vpack.c.bf16 %v187, %v183
      %196 = vst [vmem:[#allocation2] sm:$0xff] %v188
      %197 = vst [vmem:[#allocation2 + $0x8] sm:$0xff] %v189
      %198 = vst [vmem:[#allocation2 + $0x10] sm:$0xff] %v190
      %199 = vst [vmem:[#allocation2 + $0x18] sm:$0xff] %v192
      %200 = vst [vmem:[#allocation2 + $0x20] sm:$0xff] %v193
      %201 = vst [vmem:[#allocation2 + $0x28] sm:$0xff] %v194
      %210 = vrot.lane.b32.xlu0 %v188, 127
      %v211 = vpop.permute.xlu0 %210
      %212 = vrot.lane.b32.xlu0 %v189, 127
      %v213 = vpop.permute.xlu0 %212
      %214 = vrot.lane.b32.xlu0 %v190, 127
      %v215 = vpop.permute.xlu0 %214
      %216 = vrot.lane.b32.xlu0 %v191, 127
      %v217 = vpop.permute.xlu0 %216
      %218 = vrot.lane.b32.xlu0 %v192, 127
      %v219 = vpop.permute.xlu0 %218
      %220 = vrot.lane.b32.xlu0 %v193, 127
      %v221 = vpop.permute.xlu0 %220
      %222 = vrot.lane.b32.xlu0 %v194, 127
      %v223 = vpop.permute.xlu0 %222
      %224 = vrot.lane.b32.xlu0 %v195, 127
      %v225 = vpop.permute.xlu0 %224
      %vm226 = vcmask 1039360
      %v227 = vsel %vm226, %v211, %v213
      %v228 = vsel %vm226, %v213, %v215
      %v229 = vsel %vm226, %v215, %v217
      %v230 = vsel %vm226, %v219, %v221
      %v231 = vsel %vm226, %v221, %v223
      %v232 = vsel %vm226, %v223, %v225
      %239 = vst [vmem:[#allocation2 + $0x30] sm:$0xff] %v227
      %240 = vst [vmem:[#allocation2 + $0x38] sm:$0xff] %v228
      %241 = vst [vmem:[#allocation2 + $0x40] sm:$0xff] %v229
      %242 = vst [vmem:[#allocation2 + $0x48] sm:$0xff] %v230
      %243 = vst [vmem:[#allocation2 + $0x50] sm:$0xff] %v231
      %244 = vst [vmem:[#allocation2 + $0x58] sm:$0xff] %v232
      %245 = vrot.lane.b32.xlu0 %v188, 126
      %v246 = vpop.permute.xlu0 %245
      %247 = vrot.lane.b32.xlu0 %v189, 126
      %v248 = vpop.permute.xlu0 %247
      %249 = vrot.lane.b32.xlu0 %v190, 126
      %v250 = vpop.permute.xlu0 %249
      %251 = vrot.lane.b32.xlu0 %v191, 126
      %v252 = vpop.permute.xlu0 %251
      %253 = vrot.lane.b32.xlu0 %v192, 126
      %v254 = vpop.permute.xlu0 %253
      %255 = vrot.lane.b32.xlu0 %v193, 126
      %v256 = vpop.permute.xlu0 %255
      %257 = vrot.lane.b32.xlu0 %v194, 126
      %v258 = vpop.permute.xlu0 %257
      %259 = vrot.lane.b32.xlu0 %v195, 126
      %v260 = vpop.permute.xlu0 %259
      %vm261 = vcmask 1031168
      %v262 = vsel %vm261, %v246, %v248
      %v263 = vsel %vm261, %v248, %v250
      %v264 = vsel %vm261, %v250, %v252
      %v265 = vsel %vm261, %v254, %v256
      %v266 = vsel %vm261, %v256, %v258
      %v267 = vsel %vm261, %v258, %v260
      %274 = vst [vmem:[#allocation2 + $0x60] sm:$0xff] %v262
      %275 = vst [vmem:[#allocation2 + $0x68] sm:$0xff] %v263
      %276 = vst [vmem:[#allocation2 + $0x70] sm:$0xff] %v264
      %277 = vst [vmem:[#allocation2 + $0x78] sm:$0xff] %v265
      %278 = vst [vmem:[#allocation2 + $0x80] sm:$0xff] %v266
      %279 = vst [vmem:[#allocation2 + $0x88] sm:$0xff] %v267
      %280 = vrot.lane.b32.xlu0 %v188, 110
      %v281 = vpop.permute.xlu0 %280
      %282 = vrot.lane.b32.xlu0 %v189, 110
      %v283 = vpop.permute.xlu0 %282
      %284 = vrot.lane.b32.xlu0 %v190, 110
      %v285 = vpop.permute.xlu0 %284
      %286 = vrot.lane.b32.xlu0 %v191, 110
      %v287 = vpop.permute.xlu0 %286
      %288 = vrot.lane.b32.xlu0 %v192, 110
      %v289 = vpop.permute.xlu0 %288
      %290 = vrot.lane.b32.xlu0 %v193, 110
      %v291 = vpop.permute.xlu0 %290
      %292 = vrot.lane.b32.xlu0 %v194, 110
      %v293 = vpop.permute.xlu0 %292
      %294 = vrot.lane.b32.xlu0 %v195, 110
      %v295 = vpop.permute.xlu0 %294
      %vm296 = vcmask 900096
      %v297 = vsel %vm296, %v281, %v283
      %v298 = vsel %vm296, %v283, %v285
      %v299 = vsel %vm296, %v285, %v287
      %v300 = vsel %vm296, %v289, %v291
      %v301 = vsel %vm296, %v291, %v293
      %v302 = vsel %vm296, %v293, %v295
      %309 = vst [vmem:[#allocation2 + $0x90] sm:$0xff] %v297
      %310 = vst [vmem:[#allocation2 + $0x98] sm:$0xff] %v298
      %311 = vst [vmem:[#allocation2 + $0xa0] sm:$0xff] %v299
      %312 = vst [vmem:[#allocation2 + $0xa8] sm:$0xff] %v300
      %313 = vst [vmem:[#allocation2 + $0xb0] sm:$0xff] %v301
      %314 = vst [vmem:[#allocation2 + $0xb8] sm:$0xff] %v302
      %315 = vrot.lane.b32.xlu0 %v188, 109
      %v316 = vpop.permute.xlu0 %315
      %317 = vrot.lane.b32.xlu0 %v189, 109
      %v318 = vpop.permute.xlu0 %317
      %319 = vrot.lane.b32.xlu0 %v190, 109
      %v320 = vpop.permute.xlu0 %319
      %321 = vrot.lane.b32.xlu0 %v191, 109
      %v322 = vpop.permute.xlu0 %321
      %323 = vrot.lane.b32.xlu0 %v192, 109
      %v324 = vpop.permute.xlu0 %323
      %325 = vrot.lane.b32.xlu0 %v193, 109
      %v326 = vpop.permute.xlu0 %325
      %327 = vrot.lane.b32.xlu0 %v194, 109
      %v328 = vpop.permute.xlu0 %327
      %329 = vrot.lane.b32.xlu0 %v195, 109
      %v330 = vpop.permute.xlu0 %329
      %vm331 = vcmask 891904
      %v332 = vsel %vm331, %v316, %v318
      %v333 = vsel %vm331, %v318, %v320
      %v334 = vsel %vm331, %v320, %v322
      %v335 = vsel %vm331, %v324, %v326
      %v336 = vsel %vm331, %v326, %v328
      %v337 = vsel %vm331, %v328, %v330
      %344 = vst [vmem:[#allocation2 + $0xc0] sm:$0xff] %v332
      %345 = vst [vmem:[#allocation2 + $0xc8] sm:$0xff] %v333
      %346 = vst [vmem:[#allocation2 + $0xd0] sm:$0xff] %v334
      %347 = vst [vmem:[#allocation2 + $0xd8] sm:$0xff] %v335
      %348 = vst [vmem:[#allocation2 + $0xe0] sm:$0xff] %v336
      %349 = vst [vmem:[#allocation2 + $0xe8] sm:$0xff] %v337
      %350 = vrot.lane.b32.xlu0 %v188, 108
      %v351 = vpop.permute.xlu0 %350
      %352 = vrot.lane.b32.xlu0 %v189, 108
      %v353 = vpop.permute.xlu0 %352
      %354 = vrot.lane.b32.xlu0 %v190, 108
      %v355 = vpop.permute.xlu0 %354
      %356 = vrot.lane.b32.xlu0 %v191, 108
      %v357 = vpop.permute.xlu0 %356
      %358 = vrot.lane.b32.xlu0 %v192, 108
      %v359 = vpop.permute.xlu0 %358
      %360 = vrot.lane.b32.xlu0 %v193, 108
      %v361 = vpop.permute.xlu0 %360
      %362 = vrot.lane.b32.xlu0 %v194, 108
      %v363 = vpop.permute.xlu0 %362
      %364 = vrot.lane.b32.xlu0 %v195, 108
      %v365 = vpop.permute.xlu0 %364
      %vm366 = vcmask 883712
      %v367 = vsel %vm366, %v351, %v353
      %v368 = vsel %vm366, %v353, %v355
      %v369 = vsel %vm366, %v355, %v357
      %v370 = vsel %vm366, %v359, %v361
      %v371 = vsel %vm366, %v361, %v363
      %v372 = vsel %vm366, %v363, %v365
      %379 = vst [vmem:[#allocation2 + $0xf0] sm:$0xff] %v367
      %380 = vst [vmem:[#allocation2 + $0xf8] sm:$0xff] %v368
      %381 = vst [vmem:[#allocation2 + $0x100] sm:$0xff] %v369
      %382 = vst [vmem:[#allocation2 + $0x108] sm:$0xff] %v370
      %383 = vst [vmem:[#allocation2 + $0x110] sm:$0xff] %v371
      %384 = vst [vmem:[#allocation2 + $0x118] sm:$0xff] %v372
      %385 = vrot.lane.b32.xlu0 %v188, 92
      %v386 = vpop.permute.xlu0 %385
      %387 = vrot.lane.b32.xlu0 %v189, 92
      %v388 = vpop.permute.xlu0 %387
      %389 = vrot.lane.b32.xlu0 %v190, 92
      %v390 = vpop.permute.xlu0 %389
      %391 = vrot.lane.b32.xlu0 %v191, 92
      %v392 = vpop.permute.xlu0 %391
      %393 = vrot.lane.b32.xlu0 %v192, 92
      %v394 = vpop.permute.xlu0 %393
      %395 = vrot.lane.b32.xlu0 %v193, 92
      %v396 = vpop.permute.xlu0 %395
      %397 = vrot.lane.b32.xlu0 %v194, 92
      %v398 = vpop.permute.xlu0 %397
      %399 = vrot.lane.b32.xlu0 %v195, 92
      %v400 = vpop.permute.xlu0 %399
      %vm401 = vcmask 752640
      %v402 = vsel %vm401, %v386, %v388
      %v403 = vsel %vm401, %v388, %v390
      %v404 = vsel %vm401, %v390, %v392
      %v405 = vsel %vm401, %v394, %v396
      %v406 = vsel %vm401, %v396, %v398
      %v407 = vsel %vm401, %v398, %v400
      %414 = vst [vmem:[#allocation2 + $0x120] sm:$0xff] %v402
      %415 = vst [vmem:[#allocation2 + $0x128] sm:$0xff] %v403
      %416 = vst [vmem:[#allocation2 + $0x130] sm:$0xff] %v404
      %417 = vst [vmem:[#allocation2 + $0x138] sm:$0xff] %v405
      %418 = vst [vmem:[#allocation2 + $0x140] sm:$0xff] %v406
      %419 = vst [vmem:[#allocation2 + $0x148] sm:$0xff] %v407
      %420 = vrot.lane.b32.xlu0 %v188, 91
      %v421 = vpop.permute.xlu0 %420
      %422 = vrot.lane.b32.xlu0 %v189, 91
      %v423 = vpop.permute.xlu0 %422
      %424 = vrot.lane.b32.xlu0 %v190, 91
      %v425 = vpop.permute.xlu0 %424
      %426 = vrot.lane.b32.xlu0 %v191, 91
      %v427 = vpop.permute.xlu0 %426
      %428 = vrot.lane.b32.xlu0 %v192, 91
      %v429 = vpop.permute.xlu0 %428
      %430 = vrot.lane.b32.xlu0 %v193, 91
      %v431 = vpop.permute.xlu0 %430
      %432 = vrot.lane.b32.xlu0 %v194, 91
      %v433 = vpop.permute.xlu0 %432
      %434 = vrot.lane.b32.xlu0 %v195, 91
      %v435 = vpop.permute.xlu0 %434
      %vm436 = vcmask 744448
      %v437 = vsel %vm436, %v421, %v423
      %v438 = vsel %vm436, %v423, %v425
      %v439 = vsel %vm436, %v425, %v427
      %v440 = vsel %vm436, %v429, %v431
      %v441 = vsel %vm436, %v431, %v433
      %v442 = vsel %vm436, %v433, %v435
      %449 = vst [vmem:[#allocation2 + $0x150] sm:$0xff] %v437
      %450 = vst [vmem:[#allocation2 + $0x158] sm:$0xff] %v438
      %451 = vst [vmem:[#allocation2 + $0x160] sm:$0xff] %v439
      %452 = vst [vmem:[#allocation2 + $0x168] sm:$0xff] %v440
      %453 = vst [vmem:[#allocation2 + $0x170] sm:$0xff] %v441
      %454 = vst [vmem:[#allocation2 + $0x178] sm:$0xff] %v442
      %455 = vrot.lane.b32.xlu0 %v188, 90
      %v456 = vpop.permute.xlu0 %455
      %457 = vrot.lane.b32.xlu0 %v189, 90
      %v458 = vpop.permute.xlu0 %457
      %459 = vrot.lane.b32.xlu0 %v190, 90
      %v460 = vpop.permute.xlu0 %459
      %461 = vrot.lane.b32.xlu0 %v191, 90
      %v462 = vpop.permute.xlu0 %461
      %463 = vrot.lane.b32.xlu0 %v192, 90
      %v464 = vpop.permute.xlu0 %463
      %465 = vrot.lane.b32.xlu0 %v193, 90
      %v466 = vpop.permute.xlu0 %465
      %467 = vrot.lane.b32.xlu0 %v194, 90
      %v468 = vpop.permute.xlu0 %467
      %469 = vrot.lane.b32.xlu0 %v195, 90
      %v470 = vpop.permute.xlu0 %469
      %vm471 = vcmask 736256
      %v472 = vsel %vm471, %v456, %v458
      %v473 = vsel %vm471, %v458, %v460
      %v474 = vsel %vm471, %v460, %v462
      %v475 = vsel %vm471, %v464, %v466
      %v476 = vsel %vm471, %v466, %v468
      %v477 = vsel %vm471, %v468, %v470
      %484 = vst [vmem:[#allocation2 + $0x180] sm:$0xff] %v472
      %485 = vst [vmem:[#allocation2 + $0x188] sm:$0xff] %v473
      %486 = vst [vmem:[#allocation2 + $0x190] sm:$0xff] %v474
      %487 = vst [vmem:[#allocation2 + $0x198] sm:$0xff] %v475
      %488 = vst [vmem:[#allocation2 + $0x1a0] sm:$0xff] %v476
      %489 = vst [vmem:[#allocation2 + $0x1a8] sm:$0xff] %v477
      %v490 = vld [vmem:[%s1] sm:$0xff]
      %v491 = vld [vmem:[%s1 + $0x8] sm:$0xf]
      %v492 = vld [vmem:[%s1 + $0xc] sm:$0xff]
      %v493 = vld [vmem:[%s1 + $0x14] sm:$0xf]
      %v494 = vld [vmem:[%s1 + $0x18] sm:$0xff]
      %v495 = vld [vmem:[%s1 + $0x20] sm:$0xf]
      %v496 = vld [vmem:[%s1 + $0x24] sm:$0xff]
      %v497 = vld [vmem:[%s1 + $0x2c] sm:$0xf]
      %v498 = vld [vmem:[#allocation2] sm:$0xff]
      %v499 = vld [vmem:[#allocation2 + $0x8] sm:$0xff]
      %v500 = vld [vmem:[#allocation2 + $0x10] sm:$0xff]
      %v501 = vld [vmem:[#allocation2 + $0x18] sm:$0xff]
      %v502 = vld [vmem:[#allocation2 + $0x20] sm:$0xff]
      %v503 = vld [vmem:[#allocation2 + $0x28] sm:$0xff]
      %v504 = vld [vmem:[#allocation2 + $0x30] sm:$0xff]
      %v505 = vld [vmem:[#allocation2 + $0x38] sm:$0xff]
      %v506 = vld [vmem:[#allocation2 + $0x40] sm:$0xff]
      %v507 = vld [vmem:[#allocation2 + $0x48] sm:$0xff]
      %v508 = vld [vmem:[#allocation2 + $0x50] sm:$0xff]
      %v509 = vld [vmem:[#allocation2 + $0x58] sm:$0xff]
      %v510 = vld [vmem:[#allocation2 + $0x60] sm:$0xff]
      %v511 = vld [vmem:[#allocation2 + $0x68] sm:$0xff]
      %v512 = vld [vmem:[#allocation2 + $0x70] sm:$0xff]
      %v513 = vld [vmem:[#allocation2 + $0x78] sm:$0xff]
      %v514 = vld [vmem:[#allocation2 + $0x80] sm:$0xff]
      %v515 = vld [vmem:[#allocation2 + $0x88] sm:$0xff]
      %v516 = vld [vmem:[#allocation2 + $0x90] sm:$0xff]
      %v517 = vld [vmem:[#allocation2 + $0x98] sm:$0xff]
      %v518 = vld [vmem:[#allocation2 + $0xa0] sm:$0xff]
      %v519 = vld [vmem:[#allocation2 + $0xa8] sm:$0xff]
      %v520 = vld [vmem:[#allocation2 + $0xb0] sm:$0xff]
      %v521 = vld [vmem:[#allocation2 + $0xb8] sm:$0xff]
      %v522 = vld [vmem:[#allocation2 + $0xc0] sm:$0xff]
      %v523 = vld [vmem:[#allocation2 + $0xc8] sm:$0xff]
      %v524 = vld [vmem:[#allocation2 + $0xd0] sm:$0xff]
      %v525 = vld [vmem:[#allocation2 + $0xd8] sm:$0xff]
      %v526 = vld [vmem:[#allocation2 + $0xe0] sm:$0xff]
      %v527 = vld [vmem:[#allocation2 + $0xe8] sm:$0xff]
      %v528 = vld [vmem:[#allocation2 + $0xf0] sm:$0xff]
      %v529 = vld [vmem:[#allocation2 + $0xf8] sm:$0xff]
      %v530 = vld [vmem:[#allocation2 + $0x100] sm:$0xff]
      %v531 = vld [vmem:[#allocation2 + $0x108] sm:$0xff]
      %v532 = vld [vmem:[#allocation2 + $0x110] sm:$0xff]
      %v533 = vld [vmem:[#allocation2 + $0x118] sm:$0xff]
      %v534 = vld [vmem:[#allocation2 + $0x120] sm:$0xff]
      %v535 = vld [vmem:[#allocation2 + $0x128] sm:$0xff]
      %v536 = vld [vmem:[#allocation2 + $0x130] sm:$0xff]
      %v537 = vld [vmem:[#allocation2 + $0x138] sm:$0xff]
      %v538 = vld [vmem:[#allocation2 + $0x140] sm:$0xff]
      %v539 = vld [vmem:[#allocation2 + $0x148] sm:$0xff]
      %v540 = vld [vmem:[#allocation2 + $0x150] sm:$0xff]
      %v541 = vld [vmem:[#allocation2 + $0x158] sm:$0xff]
      %v542 = vld [vmem:[#allocation2 + $0x160] sm:$0xff]
      %v543 = vld [vmem:[#allocation2 + $0x168] sm:$0xff]
      %v544 = vld [vmem:[#allocation2 + $0x170] sm:$0xff]
      %v545 = vld [vmem:[#allocation2 + $0x178] sm:$0xff]
      %v546 = vld [vmem:[#allocation2 + $0x180] sm:$0xff]
      %v547 = vld [vmem:[#allocation2 + $0x188] sm:$0xff]
      %v548 = vld [vmem:[#allocation2 + $0x190] sm:$0xff]
      %v549 = vld [vmem:[#allocation2 + $0x198] sm:$0xff]
      %v550 = vld [vmem:[#allocation2 + $0x1a0] sm:$0xff]
      %v551 = vld [vmem:[#allocation2 + $0x1a8] sm:$0xff]
      %v552 = vld [vmem:[%s2] sm:$0xff]
      %v553 = vld [vmem:[%s2 + $0x8] sm:$0xff]
      %v554 = vld [vmem:[%s2 + $0x10] sm:$0xff]
      %v555 = vld [vmem:[%s2 + $0x18] sm:$0xff]
      %557 = vset.pattern.permute.xlu0 0
      %558 = vperm.xlu0 %557, %v552
      %v559 = vpop.permute.xlu0 %558
      %562 = vset.pattern.permute.xlu0 0
      %563 = vperm.xlu0 %562, %v553
      %v564 = vpop.permute.xlu0 %563
      %567 = vset.pattern.permute.xlu0 0
      %568 = vperm.xlu0 %567, %v554
      %v569 = vpop.permute.xlu0 %568
      %572 = vset.pattern.permute.xlu0 0
      %573 = vperm.xlu0 %572, %v555
      %v574 = vpop.permute.xlu0 %573
      %v584 = vunpack.c.l.b16 %v490
      %v585 = vunpack.c.h.b16 %v490
      %v586 = vunpack.c.l.b16 %v491
      %v587 = vunpack.c.l.b16 %v492
      %v588 = vunpack.c.h.b16 %v492
      %v589 = vunpack.c.l.b16 %v493
      %v590 = vunpack.c.l.b16 %v494
      %v591 = vunpack.c.h.b16 %v494
      %v592 = vunpack.c.l.b16 %v495
      %v593 = vunpack.c.l.b16 %v496
      %v594 = vunpack.c.h.b16 %v496
      %v595 = vunpack.c.l.b16 %v497
      %v596 = vpack.c.b16 %v587, %v584
      %v597 = vpack.c.b16 %v588, %v585
      %v598 = vpack.c.b16 %v589, %v586
      %v599 = vpack.c.b16 %v593, %v590
      %v600 = vpack.c.b16 %v594, %v591
      %v601 = vpack.c.b16 %v595, %v592
      %vm606 = vcmask 261120
      %v608 = vsel %vm606, %v598, 0
      %v611 = vsel %vm606, %v601, 0
      %613 = vmatprep.subr.bf16.mxu0 %v499
      %614 = vmatpush1.bf16.msra.mxu0 %v498
      %615 = vmatprep.subr.bf16.mxu0 %v502
      %616 = vmatpush1.bf16.msra.mxu0 %v501
      %617 = vmatprep.subr.bf16.mxu0 %v505
      %618 = vmatpush1.bf16.msra.mxu0 %v504
      %619 = vmatprep.subr.bf16.mxu0 %v508
      %620 = vmatpush1.bf16.msra.mxu0 %v507
      %621 = vmatprep.subr.bf16.mxu0 %v511
      %622 = vmatpush1.bf16.msra.mxu0 %v510
      %623 = vmatprep.subr.bf16.mxu0 %v514
      %624 = vmatpush1.bf16.msra.mxu0 %v513
      %625 = vmatprep.subr.bf16.mxu0 %v517
      %626 = vmatpush1.bf16.msra.mxu0 %v516
      %627 = vmatprep.subr.bf16.mxu0 %v520
      %628 = vmatpush1.bf16.msra.mxu0 %v519
      %629 = vmatprep.subr.bf16.mxu0 %v523
      %630 = vmatpush1.bf16.msra.mxu0 %v522
      %631 = vmatprep.subr.bf16.mxu0 %v526
      %632 = vmatpush1.bf16.msra.mxu0 %v525
      %633 = vmatprep.subr.bf16.mxu0 %v529
      %634 = vmatpush1.bf16.msra.mxu0 %v528
      %635 = vmatprep.subr.bf16.mxu0 %v532
      %636 = vmatpush1.bf16.msra.mxu0 %v531
      %637 = vmatprep.subr.bf16.mxu0 %v535
      %638 = vmatpush1.bf16.msra.mxu0 %v534
      %639 = vmatprep.subr.bf16.mxu0 %v538
      %640 = vmatpush1.bf16.msra.mxu0 %v537
      %641 = vmatprep.subr.bf16.mxu0 %v541
      %642 = vmatpush1.bf16.msra.mxu0 %v540
      %643 = vmatprep.subr.bf16.mxu0 %v544
      %644 = vmatpush1.bf16.msra.mxu0 %v543
      %645 = vmatprep.mubr.bf16.mxu0 %v597
      %646 = vmatmul.mubr.bf16.gmra.mrb[0].mxu0 %v596
      %v647 = vpop.f32.mrb[0].mxu0
      %v648 = vadd.f32 %v559, %v647
      %v649 = vpop.f32.mrb[0].mxu0
      %v650 = vadd.f32 %v559, %v649
      %v651 = vpop.f32.mrb[0].mxu0
      %v652 = vadd.f32 %v564, %v651
      %v653 = vpop.f32.mrb[0].mxu0
      %v654 = vadd.f32 %v564, %v653
      %655 = vmatprep.mubr.bf16.mxu0 %v600
      %656 = vmatmul.mubr.bf16.gmra.mrb[0].mxu0 %v599
      %v657 = vpop.f32.mrb[0].mxu0
      %v658 = vadd.f32 %v569, %v657
      %v659 = vpop.f32.mrb[0].mxu0
      %v660 = vadd.f32 %v569, %v659
      %v661 = vpop.f32.mrb[0].mxu0
      %v662 = vadd.f32 %v574, %v661
      %v663 = vpop.f32.mrb[0].mxu0
      %v664 = vadd.f32 %v574, %v663
      %665 = vdwg.mxu0
      %666 = vmatprep.subr.bf16.mxu0 %v547
      %667 = vmatpush1.bf16.msra.mxu0 %v546
      %668 = vmatprep.subr.bf16.mxu0 %v550
      %669 = vmatpush1.bf16.msra.mxu0 %v549
      %670 = vmatprep.subr.bf16.mxu0 0
      %671 = vmatpush1.bf16.msra.mxu0 0
      %672 = vmatprep.subr.bf16.mxu0 0
      %673 = vmatpush1.bf16.msra.mxu0 0
      %674 = vmatprep.subr.bf16.mxu0 0
      %675 = vmatpush1.bf16.msra.mxu0 0
      %676 = vmatprep.subr.bf16.mxu0 0
      %677 = vmatpush1.bf16.msra.mxu0 0
      %678 = vmatprep.subr.bf16.mxu0 0
      %679 = vmatpush1.bf16.msra.mxu0 0
      %680 = vmatprep.subr.bf16.mxu0 0
      %681 = vmatpush1.bf16.msra.mxu0 0
      %682 = vmatprep.subr.bf16.mxu0 0
      %683 = vmatpush1.bf16.msra.mxu0 0
      %684 = vmatprep.subr.bf16.mxu0 0
      %685 = vmatpush1.bf16.msra.mxu0 0
      %686 = vmatprep.subr.bf16.mxu0 0
      %687 = vmatpush1.bf16.msra.mxu0 0
      %688 = vmatprep.subr.bf16.mxu0 0
      %689 = vmatpush1.bf16.msra.mxu0 0
      %690 = vmatprep.subr.bf16.mxu0 0
      %691 = vmatpush1.bf16.msra.mxu0 0
      %692 = vmatprep.subr.bf16.mxu0 0
      %693 = vmatpush1.bf16.msra.mxu0 0
      %694 = vmatprep.subr.bf16.mxu0 0
      %695 = vmatpush1.bf16.msra.mxu0 0
      %696 = vmatprep.subr.bf16.mxu0 0
      %697 = vmatpush1.bf16.msra.mxu0 0
      %698 = vmatprep.mubr.bf16.mxu0 0
      %699 = vmatmul.mubr.bf16.gmra.mrb[0].mxu0 %v608
      %v700 = vpop.f32.mrb[0].mxu0
      %v701 = vadd.f32 %v648, %v700
      %v702 = vpop.f32.mrb[0].mxu0
      %v703 = vadd.f32 %v650, %v702
      %v704 = vpop.f32.mrb[0].mxu0
      %v705 = vadd.f32 %v652, %v704
      %v706 = vpop.f32.mrb[0].mxu0
      %v707 = vadd.f32 %v654, %v706
      %708 = vmatprep.mubr.bf16.mxu0 0
      %709 = vmatmul.mubr.bf16.gmra.mrb[0].mxu0 %v611
      %v710 = vpop.f32.mrb[0].mxu0
      %v711 = vadd.f32 %v658, %v710
      %v712 = vpop.f32.mrb[0].mxu0
      %v713 = vadd.f32 %v660, %v712
      %v714 = vpop.f32.mrb[0].mxu0
      %v715 = vadd.f32 %v662, %v714
      %v716 = vpop.f32.mrb[0].mxu0
      %v717 = vadd.f32 %v664, %v716
      %718 = vdwg.mxu0
      %719 = vmatprep.subr.bf16.mxu0 0
      %720 = vmatpush1.bf16.msra.mxu0 %v500
      %721 = vmatprep.subr.bf16.mxu0 0
      %722 = vmatpush1.bf16.msra.mxu0 %v503
      %723 = vmatprep.subr.bf16.mxu0 0
      %724 = vmatpush1.bf16.msra.mxu0 %v506
      %725 = vmatprep.subr.bf16.mxu0 0
      %726 = vmatpush1.bf16.msra.mxu0 %v509
      %727 = vmatprep.subr.bf16.mxu0 0
      %728 = vmatpush1.bf16.msra.mxu0 %v512
      %729 = vmatprep.subr.bf16.mxu0 0
      %730 = vmatpush1.bf16.msra.mxu0 %v515
      %731 = vmatprep.subr.bf16.mxu0 0
      %732 = vmatpush1.bf16.msra.mxu0 %v518
      %733 = vmatprep.subr.bf16.mxu0 0
      %734 = vmatpush1.bf16.msra.mxu0 %v521
      %735 = vmatprep.subr.bf16.mxu0 0
      %736 = vmatpush1.bf16.msra.mxu0 %v524
      %737 = vmatprep.subr.bf16.mxu0 0
      %738 = vmatpush1.bf16.msra.mxu0 %v527
      %739 = vmatprep.subr.bf16.mxu0 0
      %740 = vmatpush1.bf16.msra.mxu0 %v530
      %741 = vmatprep.subr.bf16.mxu0 0
      %742 = vmatpush1.bf16.msra.mxu0 %v533
      %743 = vmatprep.subr.bf16.mxu0 0
      %744 = vmatpush1.bf16.msra.mxu0 %v536
      %745 = vmatprep.subr.bf16.mxu0 0
      %746 = vmatpush1.bf16.msra.mxu0 %v539
      %747 = vmatprep.subr.bf16.mxu0 0
      %748 = vmatpush1.bf16.msra.mxu0 %v542
      %749 = vmatprep.subr.bf16.mxu0 0
      %750 = vmatpush1.bf16.msra.mxu0 %v545
      %751 = vmatprep.mubr.bf16.mxu0 %v597
      %752 = vmatmul.mubr.bf16.gmra.mrb[0].mxu0 %v596
      %v753 = vpop.f32.mrb[0].mxu0
      %v754 = vadd.f32 %v559, %v753
      %v755 = vpop.f32.mrb[0].mxu0
      %v756 = vpop.f32.mrb[0].mxu0
      %v757 = vadd.f32 %v564, %v756
      %v758 = vpop.f32.mrb[0].mxu0
      %759 = vmatprep.mubr.bf16.mxu0 %v600
      %760 = vmatmul.mubr.bf16.gmra.mrb[0].mxu0 %v599
      %v761 = vpop.f32.mrb[0].mxu0
      %v762 = vadd.f32 %v569, %v761
      %v763 = vpop.f32.mrb[0].mxu0
      %v764 = vpop.f32.mrb[0].mxu0
      %v765 = vadd.f32 %v574, %v764
      %v766 = vpop.f32.mrb[0].mxu0
      %767 = vdwg.mxu0
      %768 = vmatprep.subr.bf16.mxu0 0
      %769 = vmatpush1.bf16.msra.mxu0 %v548
      %770 = vmatprep.subr.bf16.mxu0 0
      %771 = vmatpush1.bf16.msra.mxu0 %v551
      %772 = vmatprep.subr.bf16.mxu0 0
      %773 = vmatpush1.bf16.msra.mxu0 0
      %774 = vmatprep.subr.bf16.mxu0 0
      %775 = vmatpush1.bf16.msra.mxu0 0
      %776 = vmatprep.subr.bf16.mxu0 0
      %777 = vmatpush1.bf16.msra.mxu0 0
      %778 = vmatprep.subr.bf16.mxu0 0
      %779 = vmatpush1.bf16.msra.mxu0 0
      %780 = vmatprep.subr.bf16.mxu0 0
      %781 = vmatpush1.bf16.msra.mxu0 0
      %782 = vmatprep.subr.bf16.mxu0 0
      %783 = vmatpush1.bf16.msra.mxu0 0
      %784 = vmatprep.subr.bf16.mxu0 0
      %785 = vmatpush1.bf16.msra.mxu0 0
      %786 = vmatprep.subr.bf16.mxu0 0
      %787 = vmatpush1.bf16.msra.mxu0 0
      %788 = vmatprep.subr.bf16.mxu0 0
      %789 = vmatpush1.bf16.msra.mxu0 0
      %790 = vmatprep.subr.bf16.mxu0 0
      %791 = vmatpush1.bf16.msra.mxu0 0
      %792 = vmatprep.subr.bf16.mxu0 0
      %793 = vmatpush1.bf16.msra.mxu0 0
      %794 = vmatprep.subr.bf16.mxu0 0
      %795 = vmatpush1.bf16.msra.mxu0 0
      %796 = vmatprep.subr.bf16.mxu0 0
      %797 = vmatpush1.bf16.msra.mxu0 0
      %798 = vmatprep.subr.bf16.mxu0 0
      %799 = vmatpush1.bf16.msra.mxu0 0
      %800 = vmatprep.mubr.bf16.mxu0 0
      %801 = vmatmul.mubr.bf16.gmra.mrb[0].mxu0 %v608
      %v802 = vpop.f32.mrb[0].mxu0
      %v803 = vadd.f32 %v754, %v802
      %v804 = vpop.f32.mrb[0].mxu0
      %v805 = vpop.f32.mrb[0].mxu0
      %v806 = vadd.f32 %v757, %v805
      %v807 = vpop.f32.mrb[0].mxu0
      %808 = vmatprep.mubr.bf16.mxu0 0
      %809 = vmatmul.mubr.bf16.gmra.mrb[0].mxu0 %v611
      %v810 = vpop.f32.mrb[0].mxu0
      %v811 = vadd.f32 %v762, %v810
      %v812 = vpop.f32.mrb[0].mxu0
      %v813 = vpop.f32.mrb[0].mxu0
      %v814 = vadd.f32 %v765, %v813
      %v815 = vpop.f32.mrb[0].mxu0
      %816 = vdwg.mxu0
      %833 = vrot.lane.b32.xlu0 %v172, 109
      %v834 = vpop.permute.xlu0 %833
      %835 = vrot.lane.b32.xlu0 %v173, 109
      %v836 = vpop.permute.xlu0 %835
      %837 = vrot.lane.b32.xlu0 %v174, 109
      %v838 = vpop.permute.xlu0 %837
      %839 = vrot.lane.b32.xlu0 %v175, 109
      %v840 = vpop.permute.xlu0 %839
      %841 = vrot.lane.b32.xlu0 %v176, 109
      %v842 = vpop.permute.xlu0 %841
      %843 = vrot.lane.b32.xlu0 %v177, 109
      %v844 = vpop.permute.xlu0 %843
      %845 = vrot.lane.b32.xlu0 %v178, 109
      %v846 = vpop.permute.xlu0 %845
      %847 = vrot.lane.b32.xlu0 %v179, 109
      %v848 = vpop.permute.xlu0 %847
      %849 = vrot.lane.b32.xlu0 %v180, 109
      %v850 = vpop.permute.xlu0 %849
      %851 = vrot.lane.b32.xlu0 %v181, 109
      %v852 = vpop.permute.xlu0 %851
      %853 = vrot.lane.b32.xlu0 %v182, 109
      %v854 = vpop.permute.xlu0 %853
      %855 = vrot.lane.b32.xlu0 %v183, 109
      %v856 = vpop.permute.xlu0 %855
      %857 = vrot.lane.b32.xlu0 %v184, 109
      %v858 = vpop.permute.xlu0 %857
      %859 = vrot.lane.b32.xlu0 %v185, 109
      %v860 = vpop.permute.xlu0 %859
      %861 = vrot.lane.b32.xlu0 %v186, 109
      %v862 = vpop.permute.xlu0 %861
      %863 = vrot.lane.b32.xlu0 %v187, 109
      %v864 = vpop.permute.xlu0 %863
      %vm865 = vcmask 891904
      %v866 = vsel %vm865, %v834, %v836
      %v867 = vsel %vm865, %v836, %v838
      %v868 = vsel %vm865, %v838, %v840
      %v869 = vsel %vm865, %v842, %v844
      %v870 = vsel %vm865, %v844, %v846
      %v871 = vsel %vm865, %v846, %v848
      %v872 = vsel %vm865, %v850, %v852
      %v873 = vsel %vm865, %v852, %v854
      %v874 = vsel %vm865, %v854, %v856
      %v875 = vsel %vm865, %v858, %v860
      %v876 = vsel %vm865, %v860, %v862
      %v877 = vsel %vm865, %v862, %v864
      %v890 = vadd.f32 %v701, %v866
      %v891 = vadd.f32 %v703, %v867
      %v892 = vadd.f32 %v803, %v868
      %v893 = vadd.f32 %v705, %v869
      %v894 = vadd.f32 %v707, %v870
      %v895 = vadd.f32 %v806, %v871
      %v896 = vadd.f32 %v711, %v872
      %v897 = vadd.f32 %v713, %v873
      %v898 = vadd.f32 %v811, %v874
      %v899 = vadd.f32 %v715, %v875
      %v900 = vadd.f32 %v717, %v876
      %v901 = vadd.f32 %v814, %v877
      %v902 = vmax.f32 %v890, 0.0
      %v903 = vmax.f32 %v891, 0.0
      %v904 = vmax.f32 %v892, 0.0
      %v905 = vmax.f32 %v893, 0.0
      %v906 = vmax.f32 %v894, 0.0
      %v907 = vmax.f32 %v895, 0.0
      %v908 = vmax.f32 %v896, 0.0
      %v909 = vmax.f32 %v897, 0.0
      %v910 = vmax.f32 %v898, 0.0
      %v911 = vmax.f32 %v899, 0.0
      %v912 = vmax.f32 %v900, 0.0
      %v913 = vmax.f32 %v901, 0.0
      %914 = vst [vmem:[%s170] sm:$0xff] %v902
      %915 = vst [vmem:[%s170 + $0x8] sm:$0xff] %v903
      %916 = vst [vmem:[%s170 + $0x10] sm:$0xff] %v904
      %917 = vst [vmem:[%s170 + $0x18] sm:$0xff] %v905
      %918 = vst [vmem:[%s170 + $0x20] sm:$0xff] %v906
      %919 = vst [vmem:[%s170 + $0x28] sm:$0xff] %v907
      %920 = vst [vmem:[%s170 + $0x30] sm:$0xff] %v908
      %921 = vst [vmem:[%s170 + $0x38] sm:$0xff] %v909
      %922 = vst [vmem:[%s170 + $0x40] sm:$0xff] %v910
      %923 = vst [vmem:[%s170 + $0x48] sm:$0xff] %v911
      %924 = vst [vmem:[%s170 + $0x50] sm:$0xff] %v912
      %925 = vst [vmem:[%s170 + $0x58] sm:$0xff] %v913
      %p926 = scmp.lt.s32.totalorder %s14, 1
      %s927 = scalar_select %p926, %s14, 1
      %s928 = smul.addr %s927, 12
      %s929 = smul.addr %s928, 8
      %s930 = scalar_lea.vmem %s3, %s929
      // Predicated region
      $region33: #{semi_basic_block.1} parent=31 // pred_check
        %p931 = pneg %p100
      $region34: #{semi_basic_block.1} parent=31 // pred_check_branch
        %933 = sbr.rel (%p931) target = $region36
      $region35: #{semi_basic_block.1} parent=31 // pred_region
        _
      $region36: #{semi_basic_block.1} parent=31 // pred_fallthru
        _
    $region32: #{semi_basic_block.1} parent=5 // pred_fallthru
      _
    %p934 = scmp.le.s32.totalorder 2, %s9
    // Predicated region
    $region37: #{semi_basic_block.1} parent=5 // pred_check
      %p935 = pneg %p934
    $region38: #{semi_basic_block.1} parent=5 // pred_check_branch
      %937 = sbr.rel (%p935) target = $region40
    $region39: #{semi_basic_block.1} parent=5 // pred_region
      %s938 = ssub.s32 %s9, 2
      // Predicated region
      $region41: #{semi_basic_block.1} parent=39 // pred_check
        %p939 = pneg %p106
      $region42: #{semi_basic_block.1} parent=39 // pred_check_branch
        %941 = sbr.rel (%p939) target = $region44
      $region43: #{semi_basic_block.1} parent=39 // pred_region
        %p942 = scmp.lt.s32.totalorder %s15, 1
        %s943 = scalar_select %p942, %s15, 1
        %s944 = smul.addr %s943, 12
        %s945 = smul.addr %s944, 8
        %s946 = scalar_lea.vmem %s3, %s945
      $region44: #{semi_basic_block.1} parent=39 // pred_fallthru
        _
    $region40: #{semi_basic_block.1} parent=5 // pred_fallthru
      _
  $region6: #{semi_basic_block.1} parent=0 // loop_footer
    %s13 = sadd.s32 1, %s9
  $region7: #{semi_basic_block.1} parent=0 // loop_footer_branch
    %8 = sbr.rel target = $region3
  $region8: #{semi_basic_block.1} parent=0 // loop_exit
    _

</llo_original>
